<compile_context>
chip_gen: v7x
topology: tpu7x:2x2x1
jax: 0.10.0
libtpu: 0.0.40
codegen_flags: <defaults>
</compile_context>

<pallas_src>
import jax
import jax.numpy as jnp
from jax.experimental import pallas as pl
from jax.experimental.pallas import tpu as pltpu


def _leaky_relu(x, negative_slope=0.2):
    return jnp.where(x > 0, x, negative_slope * x)


def _round_up(n, m):
    return ((n + m - 1) // m) * m


def classifier_kernel(x_ref,
                      w1_ref, b1_ref,
                      w2_ref, b2_ref,
                      w3_ref, b3_ref,
                      w4_ref, b4_ref,
                      o_ref):
    # Fused 4-layer MLP on one batch tile. Matmuls hit the MXU in bf16 with f32
    # accumulation; the f32->bf16 casts and bias-add + LeakyReLU run on the VPU in f32.
    h = x_ref[...].astype(jnp.bfloat16)                              # in-kernel cast

    h = jnp.dot(h, w1_ref[...], preferred_element_type=jnp.float32) + b1_ref[...]
    h = _leaky_relu(h)            # Dropout(p=0.2) -> identity in eval mode

    h = jnp.dot(h.astype(jnp.bfloat16), w2_ref[...],
                preferred_element_type=jnp.float32) + b2_ref[...]
    h = _leaky_relu(h)            # Dropout(p=0.2) -> identity in eval mode

    h = jnp.dot(h.astype(jnp.bfloat16), w3_ref[...],
                preferred_element_type=jnp.float32) + b3_ref[...]
    h = _leaky_relu(h)

    h = jnp.dot(h.astype(jnp.bfloat16), w4_ref[...],
                preferred_element_type=jnp.float32) + b4_ref[...]

    o_ref[...] = h.astype(o_ref.dtype)


def classifier_forward(x, params, *, batch_tile=1024):
    """x: (B, input_dim) float32. params: dict of f32 weights (in,out) / biases (1,out)."""
    B, input_dim = x.shape
    out_dim = params["w4"].shape[1]

    # Batch tiling:
    #  - clamp tile to the batch and force a multiple of 8 (sublane legality),
    #  - cap so the grid has >= 2 parallel steps when possible (v7x has 2 TCs that
    #    shard the "parallel" batch axis; costs ~0.35 us extra on 1-TC chips).
    tile = _round_up(max(1, min(batch_tile, B)), 8)
    tile = min(tile, _round_up(pl.cdiv(B, 2), 8))
    tile = max(tile, 8)
    grid = (pl.cdiv(B, tile),)   # ragged last block: OOB rows masked on writeback

    # bf16 weights (MXU-native); biases stay f32; x stays f32 (cast in-kernel).
    w1 = params["w1"].astype(jnp.bfloat16)
    w2 = params["w2"].astype(jnp.bfloat16)
    w3 = params["w3"].astype(jnp.bfloat16)
    w4 = params["w4"].astype(jnp.bfloat16)
    b1 = params["b1"].astype(jnp.float32)
    b2 = params["b2"].astype(jnp.float32)
    b3 = params["b3"].astype(jnp.float32)
    b4 = params["b4"].astype(jnp.float32)

    def full_block(shape):
        # Constant index_map -> block stays resident in VMEM across all grid steps.
        return pl.BlockSpec(shape, lambda i: (0,) * len(shape))

    flops = 2 * B * (input_dim * 32 + 32 * 64 + 64 * 16 + 16 * out_dim)
    bytes_accessed = (
        B * input_dim * 4                              # f32 input stream
        + B * out_dim * 4                              # f32 output stream (unpadded)
        + sum(int(w.size) * 2 for w in (w1, w2, w3, w4))
        + sum(int(b.size) * 4 for b in (b1, b2, b3, b4)))

    out = pl.pallas_call(
        classifier_kernel,
        out_shape=jax.ShapeDtypeStruct((B, out_dim), jnp.float32),
        grid_spec=pltpu.PrefetchScalarGridSpec(
            num_scalar_prefetch=0,
            grid=grid,
            in_specs=[
                pl.BlockSpec((tile, input_dim), lambda i: (i, 0)),
                full_block(w1.shape), full_block(b1.shape),
                full_block(w2.shape), full_block(b2.shape),
                full_block(w3.shape), full_block(b3.shape),
                full_block(w4.shape), full_block(b4.shape),
            ],
            out_specs=pl.BlockSpec((tile, out_dim), lambda i: (i, 0)),
        ),
        compiler_params=pltpu.CompilerParams(
            dimension_semantics=("parallel",)),
        cost_estimate=pl.CostEstimate(
            flops=flops, transcendentals=0, bytes_accessed=bytes_accessed),
    )(x, w1, b1, w2, b2, w3, b3, w4, b4)

    return out


def init_params(key, input_dim, out_dim):
    """Deterministic PyTorch-style uniform init; weights stored as (in, out)."""
    dims = [(input_dim, 32), (32, 64), (64, 16), (16, out_dim)]
    params = {}
    for idx, (fan_in, fan_out) in enumerate(dims, start=1):
        key, kw, kb = jax.random.split(key, 3)
        bound = 1.0 / jnp.sqrt(fan_in)
        params[f"w{idx}"] = jax.random.uniform(
            kw, (fan_in, fan_out), jnp.float32, -bound, bound)
        # biases kept 2D (1, fan_out) for lane-friendly layout
        params[f"b{idx}"] = jax.random.uniform(
            kb, (1, fan_out), jnp.float32, -bound, bound)
    return params


def reference_forward(x, params):
    """Pure-JAX reference with matching bf16-matmul / f32-accumulate semantics."""
    def dense(h, w, b):
        return jnp.dot(h.astype(jnp.bfloat16), w.astype(jnp.bfloat16),
                       preferred_element_type=jnp.float32) + b.astype(jnp.float32)
    h = _leaky_relu(dense(x, params["w1"], params["b1"]))
    h = _leaky_relu(dense(h, params["w2"], params["b2"]))
    h = _leaky_relu(dense(h, params["w3"], params["b3"]))
    return dense(h, params["w4"], params["b4"])


if __name__ == "__main__":
    key = jax.random.PRNGKey(0)
    k_params, k_x1, k_x2 = jax.random.split(key, 3)

    input_dim, out_dim = 32, 4
    params = init_params(k_params, input_dim, out_dim)

    # Small batch: tile clamps to the whole batch, single grid step.
    x_small = jax.random.normal(k_x1, (8, input_dim), jnp.float32)
    out_small = jax.block_until_ready(classifier_forward(x_small, params))
    ref_small = reference_forward(x_small, params)
    assert out_small.shape == (8, out_dim)
    assert jnp.allclose(out_small, ref_small, atol=2e-2, rtol=2e-2), "mismatch (small)"

    # Ragged batch with multiple grid steps: exercises the masked boundary block,
    # megacore sharding of the batch axis, and the unpadded (out_dim-wide) writeback.
    x_big = jax.random.normal(k_x2, (600, input_dim), jnp.float32)
    out_big = jax.block_until_ready(
        classifier_forward(x_big, params, batch_tile=256))
    ref_big = reference_forward(x_big, params)
    assert out_big.shape == (600, out_dim)
    assert jnp.allclose(out_big, ref_big, atol=2e-2, rtol=2e-2), "mismatch (ragged)"

    print("KERNEL_OK")
</pallas_src>

<mosaic_0001>
module attributes {stable_mosaic.version = 11 : i64} {
  func.func @classifier_kernel(%arg0: i32, %arg1: memref<8x32xf32, #tpu.memory_space<vmem>>, %arg2: memref<32x32xbf16, #tpu.memory_space<vmem>>, %arg3: memref<1x32xf32, #tpu.memory_space<vmem>>, %arg4: memref<32x64xbf16, #tpu.memory_space<vmem>>, %arg5: memref<1x64xf32, #tpu.memory_space<vmem>>, %arg6: memref<64x16xbf16, #tpu.memory_space<vmem>>, %arg7: memref<1x16xf32, #tpu.memory_space<vmem>>, %arg8: memref<16x4xbf16, #tpu.memory_space<vmem>>, %arg9: memref<1x4xf32, #tpu.memory_space<vmem>>, %arg10: memref<8x4xf32, #tpu.memory_space<vmem>>) attributes {dimension_semantics = [#tpu.dimension_semantics<parallel>], iteration_bounds = array<i64: 1>, scalar_prefetch = 0 : i64, scratch_operands = 0 : i64, tpu.core_type = #tpu.core_type<tc>, window_params = [{transform_indices = @transform_0, window_bounds = array<i64: 8, 32>}, {pipeline_mode = #tpu.pipeline_mode<synchronous>, transform_indices = @transform_1, window_bounds = array<i64: 32, 32>}, {pipeline_mode = #tpu.pipeline_mode<synchronous>, transform_indices = @transform_2, window_bounds = array<i64: 1, 32>}, {pipeline_mode = #tpu.pipeline_mode<synchronous>, transform_indices = @transform_3, window_bounds = array<i64: 32, 64>}, {pipeline_mode = #tpu.pipeline_mode<synchronous>, transform_indices = @transform_4, window_bounds = array<i64: 1, 64>}, {pipeline_mode = #tpu.pipeline_mode<synchronous>, transform_indices = @transform_5, window_bounds = array<i64: 64, 16>}, {pipeline_mode = #tpu.pipeline_mode<synchronous>, transform_indices = @transform_6, window_bounds = array<i64: 1, 16>}, {pipeline_mode = #tpu.pipeline_mode<synchronous>, transform_indices = @transform_7, window_bounds = array<i64: 16, 4>}, {pipeline_mode = #tpu.pipeline_mode<synchronous>, transform_indices = @transform_8, window_bounds = array<i64: 1, 4>}, {transform_indices = @transform_9, window_bounds = array<i64: 8, 4>}]} {
    %c0 = arith.constant 0 : index
    %c0_0 = arith.constant 0 : index
    %0 = vector.load %arg1[%c0, %c0_0] : memref<8x32xf32, #tpu.memory_space<vmem>>, vector<8x32xf32>
    %1 = arith.truncf %0 : vector<8x32xf32> to vector<8x32xbf16>
    %c0_1 = arith.constant 0 : index
    %c0_2 = arith.constant 0 : index
    %2 = vector.load %arg2[%c0_1, %c0_2] : memref<32x32xbf16, #tpu.memory_space<vmem>>, vector<32x32xbf16>
    %cst = arith.constant dense<0.000000e+00> : vector<8x32xf32>
    %3 = tpu.matmul %1, %2, %cst {dimension_numbers = #tpu.dot_dimension_numbers<[1], [0], [0], [1], [0, 0, 1, 1], [], []>} : vector<8x32xbf16>, vector<32x32xbf16>, vector<8x32xf32> -> vector<8x32xf32>
    %c0_3 = arith.constant 0 : index
    %c0_4 = arith.constant 0 : index
    %4 = vector.load %arg3[%c0_3, %c0_4] : memref<1x32xf32, #tpu.memory_space<vmem>>, vector<1x32xf32>
    %5 = vector.broadcast %4 : vector<1x32xf32> to vector<8x32xf32>
    %6 = arith.addf %3, %5 : vector<8x32xf32>
    %cst_5 = arith.constant 0.000000e+00 : f32
    %7 = vector.broadcast %cst_5 : f32 to vector<8x32xf32>
    %8 = arith.cmpf ogt, %6, %7 : vector<8x32xf32>
    %cst_6 = arith.constant 2.000000e-01 : f32
    %9 = vector.broadcast %cst_6 : f32 to vector<8x32xf32>
    %10 = arith.mulf %9, %6 : vector<8x32xf32>
    %11 = arith.select %8, %6, %10 : vector<8x32xi1>, vector<8x32xf32>
    %12 = arith.truncf %11 : vector<8x32xf32> to vector<8x32xbf16>
    %c0_7 = arith.constant 0 : index
    %c0_8 = arith.constant 0 : index
    %13 = vector.load %arg4[%c0_7, %c0_8] : memref<32x64xbf16, #tpu.memory_space<vmem>>, vector<32x64xbf16>
    %cst_9 = arith.constant dense<0.000000e+00> : vector<8x64xf32>
    %14 = tpu.matmul %12, %13, %cst_9 {dimension_numbers = #tpu.dot_dimension_numbers<[1], [0], [0], [1], [0, 0, 1, 1], [], []>} : vector<8x32xbf16>, vector<32x64xbf16>, vector<8x64xf32> -> vector<8x64xf32>
    %c0_10 = arith.constant 0 : index
    %c0_11 = arith.constant 0 : index
    %15 = vector.load %arg5[%c0_10, %c0_11] : memref<1x64xf32, #tpu.memory_space<vmem>>, vector<1x64xf32>
    %16 = vector.broadcast %15 : vector<1x64xf32> to vector<8x64xf32>
    %17 = arith.addf %14, %16 : vector<8x64xf32>
    %cst_12 = arith.constant 0.000000e+00 : f32
    %18 = vector.broadcast %cst_12 : f32 to vector<8x64xf32>
    %19 = arith.cmpf ogt, %17, %18 : vector<8x64xf32>
    %cst_13 = arith.constant 2.000000e-01 : f32
    %20 = vector.broadcast %cst_13 : f32 to vector<8x64xf32>
    %21 = arith.mulf %20, %17 : vector<8x64xf32>
    %22 = arith.select %19, %17, %21 : vector<8x64xi1>, vector<8x64xf32>
    %23 = arith.truncf %22 : vector<8x64xf32> to vector<8x64xbf16>
    %c0_14 = arith.constant 0 : index
    %c0_15 = arith.constant 0 : index
    %24 = vector.load %arg6[%c0_14, %c0_15] : memref<64x16xbf16, #tpu.memory_space<vmem>>, vector<64x16xbf16>
    %cst_16 = arith.constant dense<0.000000e+00> : vector<8x16xf32>
    %25 = tpu.matmul %23, %24, %cst_16 {dimension_numbers = #tpu.dot_dimension_numbers<[1], [0], [0], [1], [0, 0, 1, 1], [], []>} : vector<8x64xbf16>, vector<64x16xbf16>, vector<8x16xf32> -> vector<8x16xf32>
    %c0_17 = arith.constant 0 : index
    %c0_18 = arith.constant 0 : index
    %26 = vector.load %arg7[%c0_17, %c0_18] : memref<1x16xf32, #tpu.memory_space<vmem>>, vector<1x16xf32>
    %27 = vector.broadcast %26 : vector<1x16xf32> to vector<8x16xf32>
    %28 = arith.addf %25, %27 : vector<8x16xf32>
    %cst_19 = arith.constant 0.000000e+00 : f32
    %29 = vector.broadcast %cst_19 : f32 to vector<8x16xf32>
    %30 = arith.cmpf ogt, %28, %29 : vector<8x16xf32>
    %cst_20 = arith.constant 2.000000e-01 : f32
    %31 = vector.broadcast %cst_20 : f32 to vector<8x16xf32>
    %32 = arith.mulf %31, %28 : vector<8x16xf32>
    %33 = arith.select %30, %28, %32 : vector<8x16xi1>, vector<8x16xf32>
    %34 = arith.truncf %33 : vector<8x16xf32> to vector<8x16xbf16>
    %c0_21 = arith.constant 0 : index
    %c0_22 = arith.constant 0 : index
    %35 = vector.load %arg8[%c0_21, %c0_22] : memref<16x4xbf16, #tpu.memory_space<vmem>>, vector<16x4xbf16>
    %cst_23 = arith.constant dense<0.000000e+00> : vector<8x4xf32>
    %36 = tpu.matmul %34, %35, %cst_23 {dimension_numbers = #tpu.dot_dimension_numbers<[1], [0], [0], [1], [0, 0, 1, 1], [], []>} : vector<8x16xbf16>, vector<16x4xbf16>, vector<8x4xf32> -> vector<8x4xf32>
    %c0_24 = arith.constant 0 : index
    %c0_25 = arith.constant 0 : index
    %37 = vector.load %arg9[%c0_24, %c0_25] : memref<1x4xf32, #tpu.memory_space<vmem>>, vector<1x4xf32>
    %38 = vector.broadcast %37 : vector<1x4xf32> to vector<8x4xf32>
    %39 = arith.addf %36, %38 : vector<8x4xf32>
    %c0_26 = arith.constant 0 : index
    %c0_27 = arith.constant 0 : index
    %40 = vector.load %arg10[%c0_26, %c0_27] : memref<8x4xf32, #tpu.memory_space<vmem>>, vector<8x4xf32>
    tpu.vector_store %arg10[%c0_26, %c0_27], %39 {strides = array<i32>} : memref<8x4xf32, #tpu.memory_space<vmem>>, vector<8x4xf32>,
    return
  }
  func.func @transform_0(%arg0: i32) -> (i32, i32) {
    %c0_i32 = arith.constant 0 : i32
    %c0_i32_0 = arith.constant 0 : i32
    return %arg0, %c0_i32 : i32, i32
  }
  func.func @transform_1(%arg0: i32) -> (i32, i32) {
    %c0_i32 = arith.constant 0 : i32
    %c0_i32_0 = arith.constant 0 : i32
    %c0_i32_1 = arith.constant 0 : i32
    return %c0_i32, %c0_i32_0 : i32, i32
  }
  func.func @transform_2(%arg0: i32) -> (i32, i32) {
    %c0_i32 = arith.constant 0 : i32
    %c0_i32_0 = arith.constant 0 : i32
    %c0_i32_1 = arith.constant 0 : i32
    return %c0_i32, %c0_i32_0 : i32, i32
  }
  func.func @transform_3(%arg0: i32) -> (i32, i32) {
    %c0_i32 = arith.constant 0 : i32
    %c0_i32_0 = arith.constant 0 : i32
    %c0_i32_1 = arith.constant 0 : i32
    return %c0_i32, %c0_i32_0 : i32, i32
  }
  func.func @transform_4(%arg0: i32) -> (i32, i32) {
    %c0_i32 = arith.constant 0 : i32
    %c0_i32_0 = arith.constant 0 : i32
    %c0_i32_1 = arith.constant 0 : i32
    return %c0_i32, %c0_i32_0 : i32, i32
  }
  func.func @transform_5(%arg0: i32) -> (i32, i32) {
    %c0_i32 = arith.constant 0 : i32
    %c0_i32_0 = arith.constant 0 : i32
    %c0_i32_1 = arith.constant 0 : i32
    return %c0_i32, %c0_i32_0 : i32, i32
  }
  func.func @transform_6(%arg0: i32) -> (i32, i32) {
    %c0_i32 = arith.constant 0 : i32
    %c0_i32_0 = arith.constant 0 : i32
    %c0_i32_1 = arith.constant 0 : i32
    return %c0_i32, %c0_i32_0 : i32, i32
  }
  func.func @transform_7(%arg0: i32) -> (i32, i32) {
    %c0_i32 = arith.constant 0 : i32
    %c0_i32_0 = arith.constant 0 : i32
    %c0_i32_1 = arith.constant 0 : i32
    return %c0_i32, %c0_i32_0 : i32, i32
  }
  func.func @transform_8(%arg0: i32) -> (i32, i32) {
    %c0_i32 = arith.constant 0 : i32
    %c0_i32_0 = arith.constant 0 : i32
    %c0_i32_1 = arith.constant 0 : i32
    return %c0_i32, %c0_i32_0 : i32, i32
  }
  func.func @transform_9(%arg0: i32) -> (i32, i32) {
    %c0_i32 = arith.constant 0 : i32
    %c0_i32_0 = arith.constant 0 : i32
    return %arg0, %c0_i32 : i32, i32
  }
}

</mosaic_0001>

<llo_original>
// kernel: tpu_custom_call.1
$region0: #{tpu_custom_call.1}
  #allocation0 [shape = 'u32[]', space=smem, size = 0x4, offset = 0x4, fixed_abs, tag = 'smem constant byte address 0x4 - core index']
  #allocation1 [shape = 'u32[144,128]{1,0:T(1,128)}', space=vmem, size = 0x12000, scoped, tag = 'internal scratch']
  %s0 = inlined_call_operand.vmem [shape: f32[8,32], index: 0, kind: input, shape index: {}]
  %s1 = inlined_call_operand.vmem [shape: bf16[32,32], index: 1, kind: input, shape index: {}]
  %s2 = inlined_call_operand.vmem [shape: f32[1,32], index: 2, kind: input, shape index: {}]
  %s3 = inlined_call_operand.vmem [shape: bf16[32,64], index: 3, kind: input, shape index: {}]
  %s4 = inlined_call_operand.vmem [shape: f32[1,64], index: 4, kind: input, shape index: {}]
  %s5 = inlined_call_operand.vmem [shape: bf16[64,16], index: 5, kind: input, shape index: {}]
  %s6 = inlined_call_operand.vmem [shape: f32[1,16], index: 6, kind: input, shape index: {}]
  %s7 = inlined_call_operand.vmem [shape: bf16[16,4], index: 7, kind: input, shape index: {}]
  %s8 = inlined_call_operand.vmem [shape: f32[1,4], index: 8, kind: input, shape index: {}]
  %s9 = inlined_call_operand.vmem [shape: f32[8,4], index: 9, kind: output, shape index: {}]
  %s10 = sld [smem:[#allocation0]]
  $region46: #{tpu_custom_call.1} parent=0
    _
  %s12 = ssub.s32 1, %s10
  %s13 = scalar_select 0, %s12, %s10
  // Predicated region
  $region2: #{tpu_custom_call.1} parent=0 // pred_check
    _
  $region3: #{tpu_custom_call.1} parent=0 // pred_check_branch
    %15 = sbr.rel (0) target = $region5
  $region4: #{tpu_custom_call.1} parent=0 // pred_region
    _
  $region5: #{tpu_custom_call.1} parent=0 // pred_fallthru
    _
  // Predicated region
  $region6: #{tpu_custom_call.1} parent=0 // pred_check
    _
  $region7: #{tpu_custom_call.1} parent=0 // pred_check_branch
    %17 = sbr.rel (0) target = $region9
  $region8: #{tpu_custom_call.1} parent=0 // pred_region
    _
  $region9: #{tpu_custom_call.1} parent=0 // pred_fallthru
    _
  // Predicated region
  $region10: #{tpu_custom_call.1} parent=0 // pred_check
    _
  $region11: #{tpu_custom_call.1} parent=0 // pred_check_branch
    %19 = sbr.rel (0) target = $region13
  $region12: #{tpu_custom_call.1} parent=0 // pred_region
    _
  $region13: #{tpu_custom_call.1} parent=0 // pred_fallthru
    _
  // Predicated region
  $region14: #{tpu_custom_call.1} parent=0 // pred_check
    _
  $region15: #{tpu_custom_call.1} parent=0 // pred_check_branch
    %21 = sbr.rel (0) target = $region17
  $region16: #{tpu_custom_call.1} parent=0 // pred_region
    _
  $region17: #{tpu_custom_call.1} parent=0 // pred_fallthru
    _
  // Predicated region
  $region18: #{tpu_custom_call.1} parent=0 // pred_check
    _
  $region19: #{tpu_custom_call.1} parent=0 // pred_check_branch
    %23 = sbr.rel (0) target = $region21
  $region20: #{tpu_custom_call.1} parent=0 // pred_region
    _
  $region21: #{tpu_custom_call.1} parent=0 // pred_fallthru
    _
  // Predicated region
  $region22: #{tpu_custom_call.1} parent=0 // pred_check
    _
  $region23: #{tpu_custom_call.1} parent=0 // pred_check_branch
    %25 = sbr.rel (0) target = $region25
  $region24: #{tpu_custom_call.1} parent=0 // pred_region
    _
  $region25: #{tpu_custom_call.1} parent=0 // pred_fallthru
    _
  // Predicated region
  $region26: #{tpu_custom_call.1} parent=0 // pred_check
    _
  $region27: #{tpu_custom_call.1} parent=0 // pred_check_branch
    %27 = sbr.rel (0) target = $region29
  $region28: #{tpu_custom_call.1} parent=0 // pred_region
    _
  $region29: #{tpu_custom_call.1} parent=0 // pred_fallthru
    _
  // Predicated region
  $region30: #{tpu_custom_call.1} parent=0 // pred_check
    _
  $region31: #{tpu_custom_call.1} parent=0 // pred_check_branch
    %29 = sbr.rel (0) target = $region33
  $region32: #{tpu_custom_call.1} parent=0 // pred_region
    _
  $region33: #{tpu_custom_call.1} parent=0 // pred_fallthru
    _
  // Predicated region
  $region34: #{tpu_custom_call.1} parent=0 // pred_check
    _
  $region35: #{tpu_custom_call.1} parent=0 // pred_check_branch
    %31 = sbr.rel (0) target = $region37
  $region36: #{tpu_custom_call.1} parent=0 // pred_region
    _
  $region37: #{tpu_custom_call.1} parent=0 // pred_fallthru
    _
  %v33 = vld [vmem:[%s0] sm:$0xff]
  %v34 = vpack.c.bf16 %v33, %v33
  %v35 = vld [vmem:[%s1] sm:$0xf]
  %v36 = vld [vmem:[%s1 + $0x4] sm:$0xf]
  %v37 = vld [vmem:[%s1 + $0x8] sm:$0xf]
  %v38 = vld [vmem:[%s1 + $0xc] sm:$0xf]
  %v39 = vld [vmem:[%s2] sm:$0x1]
  %v41 = vlaneseq
  %v42 = vshrl.u32 %v41, 7
  %v43 = vsub.s32 0, %v42
  %v44 = vrot.slane %v39, %v43
  %v50 = vunpack.c.l.b16 %v35
  %v51 = vunpack.c.l.b16 %v36
  %v52 = vunpack.c.l.b16 %v37
  %v53 = vunpack.c.l.b16 %v38
  %v54 = vpack.c.b16 %v51, %v50
  %v55 = vpack.c.b16 %v53, %v52
  %vm58 = vcmask 261120
  %v60 = vsel %vm58, %v34, 0
  %62 = vmatprep.subr.bf16.mxu0 0
  %63 = vmatpush1.bf16.msra.mxu0 %v54
  %64 = vmatprep.subr.bf16.mxu0 0
  %65 = vmatpush1.bf16.msra.mxu0 %v55
  %66 = vmatprep.subr.bf16.mxu0 0
  %67 = vmatpush1.bf16.msra.mxu0 0
  %68 = vmatprep.subr.bf16.mxu0 0
  %69 = vmatpush1.bf16.msra.mxu0 0
  %70 = vmatprep.subr.bf16.mxu0 0
  %71 = vmatpush1.bf16.msra.mxu0 0
  %72 = vmatprep.subr.bf16.mxu0 0
  %73 = vmatpush1.bf16.msra.mxu0 0
  %74 = vmatprep.subr.bf16.mxu0 0
  %75 = vmatpush1.bf16.msra.mxu0 0
  %76 = vmatprep.subr.bf16.mxu0 0
  %77 = vmatpush1.bf16.msra.mxu0 0
  %78 = vmatprep.subr.bf16.mxu0 0
  %79 = vmatpush1.bf16.msra.mxu0 0
  %80 = vmatprep.subr.bf16.mxu0 0
  %81 = vmatpush1.bf16.msra.mxu0 0
  %82 = vmatprep.subr.bf16.mxu0 0
  %83 = vmatpush1.bf16.msra.mxu0 0
  %84 = vmatprep.subr.bf16.mxu0 0
  %85 = vmatpush1.bf16.msra.mxu0 0
  %86 = vmatprep.subr.bf16.mxu0 0
  %87 = vmatpush1.bf16.msra.mxu0 0
  %88 = vmatprep.subr.bf16.mxu0 0
  %89 = vmatpush1.bf16.msra.mxu0 0
  %90 = vmatprep.subr.bf16.mxu0 0
  %91 = vmatpush1.bf16.msra.mxu0 0
  %92 = vmatprep.subr.bf16.mxu0 0
  %93 = vmatpush1.bf16.msra.mxu0 0
  %94 = vmatprep.mubr.bf16.mxu0 0
  %95 = vmatmul.mubr.bf16.gmra.mrb[0].mxu0 %v60
  %v96 = vpop.f32.mrb[0].mxu0
  %v97 = vadd.f32 %v44, %v96
  %v98 = vpop.f32.mrb[0].mxu0
  %v99 = vpop.f32.mrb[0].mxu0
  %v100 = vpop.f32.mrb[0].mxu0
  %101 = vdwg.mxu0
  %vm102 = vcmp.gt.f32.partialorder %v97, 0.0
  %v103 = vmul.f32 %v97, 0.2
  %v104 = vsel %vm102, %v97, %v103
  %v105 = vpack.c.bf16 %v104, %v104
  %v106 = vld [vmem:[%s3] sm:$0xf]
  %v107 = vld [vmem:[%s3 + $0x4] sm:$0xf]
  %v108 = vld [vmem:[%s3 + $0x8] sm:$0xf]
  %v109 = vld [vmem:[%s3 + $0xc] sm:$0xf]
  %v110 = vld [vmem:[%s4] sm:$0x1]
  %v112 = vlaneseq
  %v113 = vshrl.u32 %v112, 7
  %v114 = vsub.s32 0, %v113
  %v115 = vrot.slane %v110, %v114
  %v121 = vunpack.c.l.b16 %v106
  %v122 = vunpack.c.l.b16 %v107
  %v123 = vunpack.c.l.b16 %v108
  %v124 = vunpack.c.l.b16 %v109
  %v125 = vpack.c.b16 %v122, %v121
  %v126 = vpack.c.b16 %v124, %v123
  %v130 = vsel %vm58, %v105, 0
  %132 = vmatprep.subr.bf16.mxu0 0
  %133 = vmatpush1.bf16.msra.mxu0 %v125
  %134 = vmatprep.subr.bf16.mxu0 0
  %135 = vmatpush1.bf16.msra.mxu0 %v126
  %136 = vmatprep.subr.bf16.mxu0 0
  %137 = vmatpush1.bf16.msra.mxu0 0
  %138 = vmatprep.subr.bf16.mxu0 0
  %139 = vmatpush1.bf16.msra.mxu0 0
  %140 = vmatprep.subr.bf16.mxu0 0
  %141 = vmatpush1.bf16.msra.mxu0 0
  %142 = vmatprep.subr.bf16.mxu0 0
  %143 = vmatpush1.bf16.msra.mxu0 0
  %144 = vmatprep.subr.bf16.mxu0 0
  %145 = vmatpush1.bf16.msra.mxu0 0
  %146 = vmatprep.subr.bf16.mxu0 0
  %147 = vmatpush1.bf16.msra.mxu0 0
  %148 = vmatprep.subr.bf16.mxu0 0
  %149 = vmatpush1.bf16.msra.mxu0 0
  %150 = vmatprep.subr.bf16.mxu0 0
  %151 = vmatpush1.bf16.msra.mxu0 0
  %152 = vmatprep.subr.bf16.mxu0 0
  %153 = vmatpush1.bf16.msra.mxu0 0
  %154 = vmatprep.subr.bf16.mxu0 0
  %155 = vmatpush1.bf16.msra.mxu0 0
  %156 = vmatprep.subr.bf16.mxu0 0
  %157 = vmatpush1.bf16.msra.mxu0 0
  %158 = vmatprep.subr.bf16.mxu0 0
  %159 = vmatpush1.bf16.msra.mxu0 0
  %160 = vmatprep.subr.bf16.mxu0 0
  %161 = vmatpush1.bf16.msra.mxu0 0
  %162 = vmatprep.subr.bf16.mxu0 0
  %163 = vmatpush1.bf16.msra.mxu0 0
  %164 = vmatprep.mubr.bf16.mxu0 0
  %165 = vmatmul.mubr.bf16.gmra.mrb[0].mxu0 %v130
  %v166 = vpop.f32.mrb[0].mxu0
  %v167 = vadd.f32 %v115, %v166
  %v168 = vpop.f32.mrb[0].mxu0
  %v169 = vpop.f32.mrb[0].mxu0
  %v170 = vpop.f32.mrb[0].mxu0
  %171 = vdwg.mxu0
  %vm172 = vcmp.gt.f32.partialorder %v167, 0.0
  %v173 = vmul.f32 %v167, 0.2
  %v174 = vsel %vm172, %v167, %v173
  %v175 = vpack.c.bf16 %v174, %v174
  %v176 = vld [vmem:[%s5] sm:$0xf]
  %v177 = vld [vmem:[%s5 + $0x4] sm:$0xf]
  %v178 = vld [vmem:[%s5 + $0x8] sm:$0xf]
  %v179 = vld [vmem:[%s5 + $0xc] sm:$0xf]
  %v180 = vld [vmem:[%s5 + $0x10] sm:$0xf]
  %v181 = vld [vmem:[%s5 + $0x14] sm:$0xf]
  %v182 = vld [vmem:[%s5 + $0x18] sm:$0xf]
  %v183 = vld [vmem:[%s5 + $0x1c] sm:$0xf]
  %v184 = vld [vmem:[%s6] sm:$0x1]
  %v186 = vlaneseq
  %v187 = vshrl.u32 %v186, 7
  %v188 = vsub.s32 0, %v187
  %v189 = vrot.slane %v184, %v188
  %v199 = vunpack.c.l.b16 %v176
  %v200 = vunpack.c.l.b16 %v177
  %v201 = vunpack.c.l.b16 %v178
  %v202 = vunpack.c.l.b16 %v179
  %v203 = vunpack.c.l.b16 %v180
  %v204 = vunpack.c.l.b16 %v181
  %v205 = vunpack.c.l.b16 %v182
  %v206 = vunpack.c.l.b16 %v183
  %v207 = vpack.c.b16 %v200, %v199
  %v208 = vpack.c.b16 %v202, %v201
  %v209 = vpack.c.b16 %v204, %v203
  %v210 = vpack.c.b16 %v206, %v205
  %vm215 = vcmask 523264
  %v217 = vsel %vm215, %v175, 0
  %219 = vmatprep.subr.bf16.mxu0 0
  %220 = vmatpush1.bf16.msra.mxu0 %v207
  %221 = vmatprep.subr.bf16.mxu0 0
  %222 = vmatpush1.bf16.msra.mxu0 %v208
  %223 = vmatprep.subr.bf16.mxu0 0
  %224 = vmatpush1.bf16.msra.mxu0 %v209
  %225 = vmatprep.subr.bf16.mxu0 0
  %226 = vmatpush1.bf16.msra.mxu0 %v210
  %227 = vmatprep.subr.bf16.mxu0 0
  %228 = vmatpush1.bf16.msra.mxu0 0
  %229 = vmatprep.subr.bf16.mxu0 0
  %230 = vmatpush1.bf16.msra.mxu0 0
  %231 = vmatprep.subr.bf16.mxu0 0
  %232 = vmatpush1.bf16.msra.mxu0 0
  %233 = vmatprep.subr.bf16.mxu0 0
  %234 = vmatpush1.bf16.msra.mxu0 0
  %235 = vmatprep.subr.bf16.mxu0 0
  %236 = vmatpush1.bf16.msra.mxu0 0
  %237 = vmatprep.subr.bf16.mxu0 0
  %238 = vmatpush1.bf16.msra.mxu0 0
  %239 = vmatprep.subr.bf16.mxu0 0
  %240 = vmatpush1.bf16.msra.mxu0 0
  %241 = vmatprep.subr.bf16.mxu0 0
  %242 = vmatpush1.bf16.msra.mxu0 0
  %243 = vmatprep.subr.bf16.mxu0 0
  %244 = vmatpush1.bf16.msra.mxu0 0
  %245 = vmatprep.subr.bf16.mxu0 0
  %246 = vmatpush1.bf16.msra.mxu0 0
  %247 = vmatprep.subr.bf16.mxu0 0
  %248 = vmatpush1.bf16.msra.mxu0 0
  %249 = vmatprep.subr.bf16.mxu0 0
  %250 = vmatpush1.bf16.msra.mxu0 0
  %251 = vmatprep.mubr.bf16.mxu0 0
  %252 = vmatmul.mubr.bf16.gmra.mrb[0].mxu0 %v217
  %v253 = vpop.f32.mrb[0].mxu0
  %v254 = vadd.f32 %v189, %v253
  %v255 = vpop.f32.mrb[0].mxu0
  %v256 = vpop.f32.mrb[0].mxu0
  %v257 = vpop.f32.mrb[0].mxu0
  %258 = vdwg.mxu0
  %vm259 = vcmp.gt.f32.partialorder %v254, 0.0
  %v260 = vmul.f32 %v254, 0.2
  %v261 = vsel %vm259, %v254, %v260
  %v262 = vpack.c.bf16 %v261, %v261
  %v263 = vld [vmem:[%s7] sm:$0xf]
  %v264 = vld [vmem:[%s7 + $0x4] sm:$0xf]
  %v265 = vld [vmem:[%s8] sm:$0x1]
  %v267 = vlaneseq
  %v268 = vshrl.u32 %v267, 7
  %v269 = vsub.s32 0, %v268
  %v270 = vrot.slane %v265, %v269
  %v274 = vunpack.c.l.b16 %v263
  %v275 = vunpack.c.l.b16 %v264
  %v276 = vpack.c.b16 %v275, %v274
  %vm278 = vcmask 130048
  %v280 = vsel %vm278, %v262, 0
  %282 = vmatprep.subr.bf16.mxu0 0
  %283 = vmatpush1.bf16.msra.mxu0 %v276
  %284 = vmatprep.subr.bf16.mxu0 0
  %285 = vmatpush1.bf16.msra.mxu0 0
  %286 = vmatprep.subr.bf16.mxu0 0
  %287 = vmatpush1.bf16.msra.mxu0 0
  %288 = vmatprep.subr.bf16.mxu0 0
  %289 = vmatpush1.bf16.msra.mxu0 0
  %290 = vmatprep.subr.bf16.mxu0 0
  %291 = vmatpush1.bf16.msra.mxu0 0
  %292 = vmatprep.subr.bf16.mxu0 0
  %293 = vmatpush1.bf16.msra.mxu0 0
  %294 = vmatprep.subr.bf16.mxu0 0
  %295 = vmatpush1.bf16.msra.mxu0 0
  %296 = vmatprep.subr.bf16.mxu0 0
  %297 = vmatpush1.bf16.msra.mxu0 0
  %298 = vmatprep.subr.bf16.mxu0 0
  %299 = vmatpush1.bf16.msra.mxu0 0
  %300 = vmatprep.subr.bf16.mxu0 0
  %301 = vmatpush1.bf16.msra.mxu0 0
  %302 = vmatprep.subr.bf16.mxu0 0
  %303 = vmatpush1.bf16.msra.mxu0 0
  %304 = vmatprep.subr.bf16.mxu0 0
  %305 = vmatpush1.bf16.msra.mxu0 0
  %306 = vmatprep.subr.bf16.mxu0 0
  %307 = vmatpush1.bf16.msra.mxu0 0
  %308 = vmatprep.subr.bf16.mxu0 0
  %309 = vmatpush1.bf16.msra.mxu0 0
  %310 = vmatprep.subr.bf16.mxu0 0
  %311 = vmatpush1.bf16.msra.mxu0 0
  %312 = vmatprep.subr.bf16.mxu0 0
  %313 = vmatpush1.bf16.msra.mxu0 0
  %314 = vmatprep.mubr.bf16.mxu0 0
  %315 = vmatmul.mubr.bf16.gmra.mrb[0].mxu0 %v280
  %v316 = vpop.f32.mrb[0].mxu0
  %v317 = vadd.f32 %v270, %v316
  %v318 = vpop.f32.mrb[0].mxu0
  %v319 = vpop.f32.mrb[0].mxu0
  %v320 = vpop.f32.mrb[0].mxu0
  %321 = vdwg.mxu0
  %vm322 = vcmask 31744
  %323 = vst.msk [vmem:[%s9] sm:$0xff] %vm322, %v317
  // Predicated region
  $region38: #{tpu_custom_call.1} parent=0 // pred_check
    _
  $region39: #{tpu_custom_call.1} parent=0 // pred_check_branch
    %325 = sbr.rel (0) target = $region41
  $region40: #{tpu_custom_call.1} parent=0 // pred_region
    _
  $region41: #{tpu_custom_call.1} parent=0 // pred_fallthru
    _
  // Predicated region
  $region42: #{tpu_custom_call.1} parent=0 // pred_check
    _
  $region43: #{tpu_custom_call.1} parent=0 // pred_check_branch
    %327 = sbr.rel (0) target = $region45
  $region44: #{tpu_custom_call.1} parent=0 // pred_region
    _
  $region45: #{tpu_custom_call.1} parent=0 // pred_fallthru
    _

</llo_original>
